<compile_context>
chip_gen: v6e
topology: v6e:2x2x1
jax: 0.10.0
libtpu: 0.0.40
codegen_flags: <defaults>
</compile_context>

<pallas_src>
import jax
import jax.numpy as jnp
from jax.experimental import pallas as pl
from jax.experimental.pallas import tpu as pltpu

IN_DIM = 784
WIDTH = 10           # default width
OUT_DIM = 10
OUT_PAD = 128        # lane-dense padded output width (wrapper slices back to OUT_DIM)
MAX_TILE_B = 2048    # double-buffered f32 x (~12.5 MiB) + bf16 out (~1 MiB) per tile
BATCH = 8


def _round_up(x, m):
    return (x + m - 1) // m * m


def _sigmoid_f32(h):
    # Clamp so exp(-h) cannot overflow in f32; exp + approx-rcp both run on the EUP.
    h = jnp.clip(h, -30.0, 30.0)
    return pl.reciprocal(1.0 + jnp.exp(-h), approx=True)


def mlp_kernel(x_ref, w0_ref, b0_ref, w1_ref, b1_ref, w2_ref, b2_ref, o_ref):
    """Fused 3-layer MLP on one batch tile (bf16 MXU operands, f32 elementwise)."""
    # in-kernel cast: x travels HBM->VMEM as f32 once; no wrapper-side copy
    x = x_ref[...].astype(jnp.bfloat16)
    # layer 0: Linear(784, width), no activation
    h = jnp.dot(x, w0_ref[...], preferred_element_type=jnp.float32) + b0_ref[...]
    # layer 1: Linear(width, width) + sigmoid
    h = jnp.dot(h.astype(jnp.bfloat16), w1_ref[...],
                preferred_element_type=jnp.float32) + b1_ref[...]
    h = _sigmoid_f32(h)
    # layer 2: Linear(width, 10 -> padded to 128 lanes) + sigmoid
    h = jnp.dot(h.astype(jnp.bfloat16), w2_ref[...],
                preferred_element_type=jnp.float32) + b2_ref[...]
    h = _sigmoid_f32(h)
    o_ref[...] = h.astype(o_ref.dtype)


def prepare_params(params):
    """One-time cast/pad of parameters into kernel layout (do NOT repeat per call).

    Weights -> bf16 (MXU-native). Final layer zero-padded to OUT_PAD lanes so the
    output block is lane-dense. Biases stay f32 (elementwise path).
    """
    (w0, b0), (w1, b1), (w2, b2) = params
    w2p = jnp.pad(w2, ((0, 0), (0, OUT_PAD - w2.shape[1])))
    b2p = jnp.pad(b2, ((0, 0), (0, OUT_PAD - b2.shape[1])))
    return (w0.astype(jnp.bfloat16), b0.astype(jnp.float32),
            w1.astype(jnp.bfloat16), b1.astype(jnp.float32),
            w2p.astype(jnp.bfloat16), b2p.astype(jnp.float32))


@jax.jit
def mlp_net_pallas(x, prepared):
    w0, b0, w1, b1, w2, b2 = prepared
    B = x.shape[0]

    # Pick tile_b so (a) it fits VMEM, (b) the grid has >=2 steps when B is big
    # enough (feeds both v7x TensorCores via dimension_semantics="parallel").
    tile_b = min(MAX_TILE_B, max(8, _round_up(pl.cdiv(B, 2), 8)))
    n_tiles = pl.cdiv(B, tile_b)          # ragged last block handled by Pallas

    grid_spec = pltpu.PrefetchScalarGridSpec(
        num_scalar_prefetch=0,
        grid=(n_tiles,),
        in_specs=[
            pl.BlockSpec((tile_b, IN_DIM), lambda i: (i, 0)),   # x streamed (f32)
            pl.BlockSpec((IN_DIM, WIDTH), lambda i: (0, 0)),    # params VMEM-resident
            pl.BlockSpec((1, WIDTH), lambda i: (0, 0)),
            pl.BlockSpec((WIDTH, WIDTH), lambda i: (0, 0)),
            pl.BlockSpec((1, WIDTH), lambda i: (0, 0)),
            pl.BlockSpec((WIDTH, OUT_PAD), lambda i: (0, 0)),
            pl.BlockSpec((1, OUT_PAD), lambda i: (0, 0)),
        ],
        out_specs=pl.BlockSpec((tile_b, OUT_PAD), lambda i: (i, 0)),
    )

    # Honest scheduler hint: true math FLOPs (OUT_DIM, not OUT_PAD), 2 transcendental
    # ops per sigmoid element (exp + rcp), bytes matching actual HBM traffic.
    flops = 2 * B * (IN_DIM * WIDTH + WIDTH * WIDTH + WIDTH * OUT_DIM)
    transcendentals = 2 * B * (WIDTH + OUT_DIM)
    bytes_accessed = (B * IN_DIM * 4                              # x, f32
                      + (w0.size + w1.size + w2.size) * 2        # weights, bf16
                      + (b0.size + b1.size + b2.size) * 4        # biases, f32
                      + B * OUT_PAD * 2)                         # output, bf16

    out = pl.pallas_call(
        mlp_kernel,
        out_shape=jax.ShapeDtypeStruct((B, OUT_PAD), jnp.bfloat16),
        grid_spec=grid_spec,
        compiler_params=pltpu.CompilerParams(
            dimension_semantics=("parallel",),        # shard batch tiles across TCs
            vmem_limit_bytes=32 * 1024 * 1024),       # headroom for 2048-row tiles
        cost_estimate=pl.CostEstimate(
            flops=flops,
            transcendentals=transcendentals,
            bytes_accessed=bytes_accessed),
    )(x, w0, b0, w1, b1, w2, b2)

    # Slice padded lanes off; cast the tiny [B, 10] result back to f32.
    return out[:, :OUT_DIM].astype(jnp.float32)


def init_params(key):
    # Deterministic synthetic init (uniform, PyTorch-Linear-like fan_in scaling), f32.
    ks = jax.random.split(key, 6)

    def lin(kw, kb, fan_in, fan_out):
        bound = 1.0 / jnp.sqrt(fan_in)
        w = jax.random.uniform(kw, (fan_in, fan_out), jnp.float32, -bound, bound)
        b = jax.random.uniform(kb, (1, fan_out), jnp.float32, -bound, bound)
        return w, b

    p0 = lin(ks[0], ks[1], IN_DIM, WIDTH)
    p1 = lin(ks[2], ks[3], WIDTH, WIDTH)
    p2 = lin(ks[4], ks[5], WIDTH, OUT_DIM)
    return (p0, p1, p2)


def mlp_net_ref(x, params):
    # Pure-JAX f32 reference of the PyTorch forward semantics.
    (w0, b0), (w1, b1), (w2, b2) = params
    h = x @ w0 + b0
    h = jax.nn.sigmoid(h @ w1 + b1)
    h = jax.nn.sigmoid(h @ w2 + b2)
    return h


if __name__ == "__main__":
    key = jax.random.PRNGKey(0)
    kx, kp = jax.random.split(key)
    x = jax.random.normal(kx, (BATCH, IN_DIM), dtype=jnp.float32)
    params = init_params(kp)
    prepared = prepare_params(params)   # cast/pad once, not per call

    out = jax.block_until_ready(mlp_net_pallas(x, prepared))
    ref = mlp_net_ref(x, params)

    assert out.shape == (BATCH, OUT_DIM)
    # bf16 matmul operands + bf16 output + approx reciprocal -> loosened tolerance.
    assert jnp.allclose(out, ref, atol=2e-2, rtol=2e-2), float(jnp.max(jnp.abs(out - ref)))

    print("KERNEL_OK")
</pallas_src>

<mosaic_0001>
module attributes {stable_mosaic.version = 11 : i64} {
  func.func @mlp_kernel(%arg0: i32, %arg1: memref<8x784xf32, #tpu.memory_space<vmem>>, %arg2: memref<784x10xbf16, #tpu.memory_space<vmem>>, %arg3: memref<1x10xf32, #tpu.memory_space<vmem>>, %arg4: memref<10x10xbf16, #tpu.memory_space<vmem>>, %arg5: memref<1x10xf32, #tpu.memory_space<vmem>>, %arg6: memref<10x128xbf16, #tpu.memory_space<vmem>>, %arg7: memref<1x128xf32, #tpu.memory_space<vmem>>, %arg8: memref<8x128xbf16, #tpu.memory_space<vmem>>) attributes {dimension_semantics = [#tpu.dimension_semantics<parallel>], iteration_bounds = array<i64: 1>, scalar_prefetch = 0 : i64, scratch_operands = 0 : i64, tpu.core_type = #tpu.core_type<tc>, window_params = [{transform_indices = @transform_0, window_bounds = array<i64: 8, 784>}, {pipeline_mode = #tpu.pipeline_mode<synchronous>, transform_indices = @transform_1, window_bounds = array<i64: 784, 10>}, {pipeline_mode = #tpu.pipeline_mode<synchronous>, transform_indices = @transform_2, window_bounds = array<i64: 1, 10>}, {pipeline_mode = #tpu.pipeline_mode<synchronous>, transform_indices = @transform_3, window_bounds = array<i64: 10, 10>}, {pipeline_mode = #tpu.pipeline_mode<synchronous>, transform_indices = @transform_4, window_bounds = array<i64: 1, 10>}, {pipeline_mode = #tpu.pipeline_mode<synchronous>, transform_indices = @transform_5, window_bounds = array<i64: 10, 128>}, {pipeline_mode = #tpu.pipeline_mode<synchronous>, transform_indices = @transform_6, window_bounds = array<i64: 1, 128>}, {transform_indices = @transform_7, window_bounds = array<i64: 8, 128>}]} {
    %c0 = arith.constant 0 : index
    %c0_0 = arith.constant 0 : index
    %0 = vector.load %arg1[%c0, %c0_0] : memref<8x784xf32, #tpu.memory_space<vmem>>, vector<8x784xf32>
    %1 = arith.truncf %0 : vector<8x784xf32> to vector<8x784xbf16>
    %c0_1 = arith.constant 0 : index
    %c0_2 = arith.constant 0 : index
    %2 = vector.load %arg2[%c0_1, %c0_2] : memref<784x10xbf16, #tpu.memory_space<vmem>>, vector<784x10xbf16>
    %cst = arith.constant dense<0.000000e+00> : vector<8x10xf32>
    %3 = tpu.matmul %1, %2, %cst {dimension_numbers = #tpu.dot_dimension_numbers<[1], [0], [0], [1], [0, 0, 1, 1], [], []>} : vector<8x784xbf16>, vector<784x10xbf16>, vector<8x10xf32> -> vector<8x10xf32>
    %c0_3 = arith.constant 0 : index
    %c0_4 = arith.constant 0 : index
    %4 = vector.load %arg3[%c0_3, %c0_4] : memref<1x10xf32, #tpu.memory_space<vmem>>, vector<1x10xf32>
    %5 = vector.broadcast %4 : vector<1x10xf32> to vector<8x10xf32>
    %6 = arith.addf %3, %5 : vector<8x10xf32>
    %7 = arith.truncf %6 : vector<8x10xf32> to vector<8x10xbf16>
    %c0_5 = arith.constant 0 : index
    %c0_6 = arith.constant 0 : index
    %8 = vector.load %arg4[%c0_5, %c0_6] : memref<10x10xbf16, #tpu.memory_space<vmem>>, vector<10x10xbf16>
    %cst_7 = arith.constant dense<0.000000e+00> : vector<8x10xf32>
    %9 = tpu.matmul %7, %8, %cst_7 {dimension_numbers = #tpu.dot_dimension_numbers<[1], [0], [0], [1], [0, 0, 1, 1], [], []>} : vector<8x10xbf16>, vector<10x10xbf16>, vector<8x10xf32> -> vector<8x10xf32>
    %c0_8 = arith.constant 0 : index
    %c0_9 = arith.constant 0 : index
    %10 = vector.load %arg5[%c0_8, %c0_9] : memref<1x10xf32, #tpu.memory_space<vmem>>, vector<1x10xf32>
    %11 = vector.broadcast %10 : vector<1x10xf32> to vector<8x10xf32>
    %12 = arith.addf %9, %11 : vector<8x10xf32>
    %cst_10 = arith.constant -3.000000e+01 : f32
    %cst_11 = arith.constant 3.000000e+01 : f32
    %13 = vector.broadcast %cst_10 : f32 to vector<8x10xf32>
    %14 = arith.maximumf %13, %12 : vector<8x10xf32>
    %15 = vector.broadcast %cst_11 : f32 to vector<8x10xf32>
    %16 = arith.minimumf %15, %14 : vector<8x10xf32>
    %cst_12 = arith.constant 0.000000e+00 : f32
    %17 = vector.broadcast %cst_12 : f32 to vector<8x10xf32>
    %18 = arith.subf %17, %16 : vector<8x10xf32>
    %19 = math.exp %18 : vector<8x10xf32>
    %cst_13 = arith.constant 1.000000e+00 : f32
    %20 = vector.broadcast %cst_13 : f32 to vector<8x10xf32>
    %21 = arith.addf %20, %19 : vector<8x10xf32>
    %22 = tpu.reciprocal %21 {approx = true} : vector<8x10xf32> -> vector<8x10xf32>
    %23 = arith.truncf %22 : vector<8x10xf32> to vector<8x10xbf16>
    %c0_14 = arith.constant 0 : index
    %c0_15 = arith.constant 0 : index
    %24 = vector.load %arg6[%c0_14, %c0_15] : memref<10x128xbf16, #tpu.memory_space<vmem>>, vector<10x128xbf16>
    %cst_16 = arith.constant dense<0.000000e+00> : vector<8x128xf32>
    %25 = tpu.matmul %23, %24, %cst_16 {dimension_numbers = #tpu.dot_dimension_numbers<[1], [0], [0], [1], [0, 0, 1, 1], [], []>} : vector<8x10xbf16>, vector<10x128xbf16>, vector<8x128xf32> -> vector<8x128xf32>
    %c0_17 = arith.constant 0 : index
    %c0_18 = arith.constant 0 : index
    %26 = vector.load %arg7[%c0_17, %c0_18] : memref<1x128xf32, #tpu.memory_space<vmem>>, vector<1x128xf32>
    %27 = vector.broadcast %26 : vector<1x128xf32> to vector<8x128xf32>
    %28 = arith.addf %25, %27 : vector<8x128xf32>
    %cst_19 = arith.constant -3.000000e+01 : f32
    %cst_20 = arith.constant 3.000000e+01 : f32
    %29 = vector.broadcast %cst_19 : f32 to vector<8x128xf32>
    %30 = arith.maximumf %29, %28 : vector<8x128xf32>
    %31 = vector.broadcast %cst_20 : f32 to vector<8x128xf32>
    %32 = arith.minimumf %31, %30 : vector<8x128xf32>
    %cst_21 = arith.constant 0.000000e+00 : f32
    %33 = vector.broadcast %cst_21 : f32 to vector<8x128xf32>
    %34 = arith.subf %33, %32 : vector<8x128xf32>
    %35 = math.exp %34 : vector<8x128xf32>
    %cst_22 = arith.constant 1.000000e+00 : f32
    %36 = vector.broadcast %cst_22 : f32 to vector<8x128xf32>
    %37 = arith.addf %36, %35 : vector<8x128xf32>
    %38 = tpu.reciprocal %37 {approx = true} : vector<8x128xf32> -> vector<8x128xf32>
    %39 = arith.truncf %38 : vector<8x128xf32> to vector<8x128xbf16>
    %c0_23 = arith.constant 0 : index
    %c0_24 = arith.constant 0 : index
    %40 = vector.load %arg8[%c0_23, %c0_24] : memref<8x128xbf16, #tpu.memory_space<vmem>>, vector<8x128xbf16>
    tpu.vector_store %arg8[%c0_23, %c0_24], %39 {strides = array<i32>} : memref<8x128xbf16, #tpu.memory_space<vmem>>, vector<8x128xbf16>,
    return
  }
  func.func @transform_0(%arg0: i32) -> (i32, i32) {
    %c0_i32 = arith.constant 0 : i32
    %c0_i32_0 = arith.constant 0 : i32
    return %arg0, %c0_i32 : i32, i32
  }
  func.func @transform_1(%arg0: i32) -> (i32, i32) {
    %c0_i32 = arith.constant 0 : i32
    %c0_i32_0 = arith.constant 0 : i32
    %c0_i32_1 = arith.constant 0 : i32
    return %c0_i32, %c0_i32_0 : i32, i32
  }
  func.func @transform_2(%arg0: i32) -> (i32, i32) {
    %c0_i32 = arith.constant 0 : i32
    %c0_i32_0 = arith.constant 0 : i32
    %c0_i32_1 = arith.constant 0 : i32
    return %c0_i32, %c0_i32_0 : i32, i32
  }
  func.func @transform_3(%arg0: i32) -> (i32, i32) {
    %c0_i32 = arith.constant 0 : i32
    %c0_i32_0 = arith.constant 0 : i32
    %c0_i32_1 = arith.constant 0 : i32
    return %c0_i32, %c0_i32_0 : i32, i32
  }
  func.func @transform_4(%arg0: i32) -> (i32, i32) {
    %c0_i32 = arith.constant 0 : i32
    %c0_i32_0 = arith.constant 0 : i32
    %c0_i32_1 = arith.constant 0 : i32
    return %c0_i32, %c0_i32_0 : i32, i32
  }
  func.func @transform_5(%arg0: i32) -> (i32, i32) {
    %c0_i32 = arith.constant 0 : i32
    %c0_i32_0 = arith.constant 0 : i32
    %c0_i32_1 = arith.constant 0 : i32
    return %c0_i32, %c0_i32_0 : i32, i32
  }
  func.func @transform_6(%arg0: i32) -> (i32, i32) {
    %c0_i32 = arith.constant 0 : i32
    %c0_i32_0 = arith.constant 0 : i32
    %c0_i32_1 = arith.constant 0 : i32
    return %c0_i32, %c0_i32_0 : i32, i32
  }
  func.func @transform_7(%arg0: i32) -> (i32, i32) {
    %c0_i32 = arith.constant 0 : i32
    %c0_i32_0 = arith.constant 0 : i32
    return %arg0, %c0_i32 : i32, i32
  }
}

</mosaic_0001>

<llo_original>
// kernel: mlp_net_pallas.1
$region0: #{mlp_net_pallas.1}
  #allocation0 [shape = 'u32[]', space=smem, size = 0x4, offset = 0x4, fixed_abs, tag = 'smem constant byte address 0x4 - core index']
  #allocation1 [shape = 'u32[144,128]{1,0:T(1,128)}', space=vmem, size = 0x12000, scoped, tag = 'internal scratch']
  %s0 = inlined_call_operand.vmem [shape: f32[8,784], index: 0, kind: input, shape index: {}]
  %s1 = inlined_call_operand.vmem [shape: bf16[784,10], index: 1, kind: input, shape index: {}]
  %s2 = inlined_call_operand.vmem [shape: f32[1,10], index: 2, kind: input, shape index: {}]
  %s3 = inlined_call_operand.vmem [shape: bf16[10,10], index: 3, kind: input, shape index: {}]
  %s4 = inlined_call_operand.vmem [shape: f32[1,10], index: 4, kind: input, shape index: {}]
  %s5 = inlined_call_operand.vmem [shape: bf16[10,128], index: 5, kind: input, shape index: {}]
  %s6 = inlined_call_operand.vmem [shape: f32[1,128], index: 6, kind: input, shape index: {}]
  %s7 = inlined_call_operand.vmem [shape: bf16[8,128], index: 7, kind: output, shape index: {}]
  %s8 = sld [smem:[#allocation0]]
  $region38: #{mlp_net_pallas.1} parent=0
    _
  %s10 = ssub.s32 1, %s8
  %s11 = scalar_select 0, %s10, %s8
  // Predicated region
  $region2: #{mlp_net_pallas.1} parent=0 // pred_check
    _
  $region3: #{mlp_net_pallas.1} parent=0 // pred_check_branch
    %13 = sbr.rel (0) target = $region5
  $region4: #{mlp_net_pallas.1} parent=0 // pred_region
    _
  $region5: #{mlp_net_pallas.1} parent=0 // pred_fallthru
    _
  // Predicated region
  $region6: #{mlp_net_pallas.1} parent=0 // pred_check
    _
  $region7: #{mlp_net_pallas.1} parent=0 // pred_check_branch
    %15 = sbr.rel (0) target = $region9
  $region8: #{mlp_net_pallas.1} parent=0 // pred_region
    _
  $region9: #{mlp_net_pallas.1} parent=0 // pred_fallthru
    _
  // Predicated region
  $region10: #{mlp_net_pallas.1} parent=0 // pred_check
    _
  $region11: #{mlp_net_pallas.1} parent=0 // pred_check_branch
    %17 = sbr.rel (0) target = $region13
  $region12: #{mlp_net_pallas.1} parent=0 // pred_region
    _
  $region13: #{mlp_net_pallas.1} parent=0 // pred_fallthru
    _
  // Predicated region
  $region14: #{mlp_net_pallas.1} parent=0 // pred_check
    _
  $region15: #{mlp_net_pallas.1} parent=0 // pred_check_branch
    %19 = sbr.rel (0) target = $region17
  $region16: #{mlp_net_pallas.1} parent=0 // pred_region
    _
  $region17: #{mlp_net_pallas.1} parent=0 // pred_fallthru
    _
  // Predicated region
  $region18: #{mlp_net_pallas.1} parent=0 // pred_check
    _
  $region19: #{mlp_net_pallas.1} parent=0 // pred_check_branch
    %21 = sbr.rel (0) target = $region21
  $region20: #{mlp_net_pallas.1} parent=0 // pred_region
    _
  $region21: #{mlp_net_pallas.1} parent=0 // pred_fallthru
    _
  // Predicated region
  $region22: #{mlp_net_pallas.1} parent=0 // pred_check
    _
  $region23: #{mlp_net_pallas.1} parent=0 // pred_check_branch
    %23 = sbr.rel (0) target = $region25
  $region24: #{mlp_net_pallas.1} parent=0 // pred_region
    _
  $region25: #{mlp_net_pallas.1} parent=0 // pred_fallthru
    _
  // Predicated region
  $region26: #{mlp_net_pallas.1} parent=0 // pred_check
    _
  $region27: #{mlp_net_pallas.1} parent=0 // pred_check_branch
    %25 = sbr.rel (0) target = $region29
  $region28: #{mlp_net_pallas.1} parent=0 // pred_region
    _
  $region29: #{mlp_net_pallas.1} parent=0 // pred_fallthru
    _
  %v27 = vld [vmem:[%s0] sm:$0xff]
  %v28 = vld [vmem:[%s0 + $0x8] sm:$0xff]
  %v29 = vld [vmem:[%s0 + $0x10] sm:$0xff]
  %v30 = vld [vmem:[%s0 + $0x18] sm:$0xff]
  %v31 = vld [vmem:[%s0 + $0x20] sm:$0xff]
  %v32 = vld [vmem:[%s0 + $0x28] sm:$0xff]
  %v33 = vld [vmem:[%s0 + $0x30] sm:$0xff]
  %v34 = vpack.c.bf16 %v27, %v27
  %v35 = vpack.c.bf16 %v28, %v28
  %v36 = vpack.c.bf16 %v29, %v29
  %v37 = vpack.c.bf16 %v30, %v30
  %v38 = vpack.c.bf16 %v31, %v31
  %v39 = vpack.c.bf16 %v32, %v32
  %v40 = vpack.c.bf16 %v33, %v33
  %v41 = vld [vmem:[%s1] sm:$0xf]
  %v42 = vld [vmem:[%s1 + $0x4] sm:$0xf]
  %v43 = vld [vmem:[%s1 + $0x8] sm:$0xf]
  %v44 = vld [vmem:[%s1 + $0xc] sm:$0xf]
  %v45 = vld [vmem:[%s1 + $0x10] sm:$0xf]
  %v46 = vld [vmem:[%s1 + $0x14] sm:$0xf]
  %v47 = vld [vmem:[%s1 + $0x18] sm:$0xf]
  %v48 = vld [vmem:[%s1 + $0x1c] sm:$0xf]
  %v49 = vld [vmem:[%s1 + $0x20] sm:$0xf]
  %v50 = vld [vmem:[%s1 + $0x24] sm:$0xf]
  %v51 = vld [vmem:[%s1 + $0x28] sm:$0xf]
  %v52 = vld [vmem:[%s1 + $0x2c] sm:$0xf]
  %v53 = vld [vmem:[%s1 + $0x30] sm:$0xf]
  %v54 = vld [vmem:[%s1 + $0x34] sm:$0xf]
  %v55 = vld [vmem:[%s1 + $0x38] sm:$0xf]
  %v56 = vld [vmem:[%s1 + $0x3c] sm:$0xf]
  %v57 = vld [vmem:[%s1 + $0x40] sm:$0xf]
  %v58 = vld [vmem:[%s1 + $0x44] sm:$0xf]
  %v59 = vld [vmem:[%s1 + $0x48] sm:$0xf]
  %v60 = vld [vmem:[%s1 + $0x4c] sm:$0xf]
  %v61 = vld [vmem:[%s1 + $0x50] sm:$0xf]
  %v62 = vld [vmem:[%s1 + $0x54] sm:$0xf]
  %v63 = vld [vmem:[%s1 + $0x58] sm:$0xf]
  %v64 = vld [vmem:[%s1 + $0x5c] sm:$0xf]
  %v65 = vld [vmem:[%s1 + $0x60] sm:$0xf]
  %v66 = vld [vmem:[%s1 + $0x64] sm:$0xf]
  %v67 = vld [vmem:[%s1 + $0x68] sm:$0xf]
  %v68 = vld [vmem:[%s1 + $0x6c] sm:$0xf]
  %v69 = vld [vmem:[%s1 + $0x70] sm:$0xf]
  %v70 = vld [vmem:[%s1 + $0x74] sm:$0xf]
  %v71 = vld [vmem:[%s1 + $0x78] sm:$0xf]
  %v72 = vld [vmem:[%s1 + $0x7c] sm:$0xf]
  %v73 = vld [vmem:[%s1 + $0x80] sm:$0xf]
  %v74 = vld [vmem:[%s1 + $0x84] sm:$0xf]
  %v75 = vld [vmem:[%s1 + $0x88] sm:$0xf]
  %v76 = vld [vmem:[%s1 + $0x8c] sm:$0xf]
  %v77 = vld [vmem:[%s1 + $0x90] sm:$0xf]
  %v78 = vld [vmem:[%s1 + $0x94] sm:$0xf]
  %v79 = vld [vmem:[%s1 + $0x98] sm:$0xf]
  %v80 = vld [vmem:[%s1 + $0x9c] sm:$0xf]
  %v81 = vld [vmem:[%s1 + $0xa0] sm:$0xf]
  %v82 = vld [vmem:[%s1 + $0xa4] sm:$0xf]
  %v83 = vld [vmem:[%s1 + $0xa8] sm:$0xf]
  %v84 = vld [vmem:[%s1 + $0xac] sm:$0xf]
  %v85 = vld [vmem:[%s1 + $0xb0] sm:$0xf]
  %v86 = vld [vmem:[%s1 + $0xb4] sm:$0xf]
  %v87 = vld [vmem:[%s1 + $0xb8] sm:$0xf]
  %v88 = vld [vmem:[%s1 + $0xbc] sm:$0xf]
  %v89 = vld [vmem:[%s1 + $0xc0] sm:$0xf]
  %v90 = vld [vmem:[%s1 + $0xc4] sm:$0xf]
  %v91 = vld [vmem:[%s1 + $0xc8] sm:$0xf]
  %v92 = vld [vmem:[%s1 + $0xcc] sm:$0xf]
  %v93 = vld [vmem:[%s1 + $0xd0] sm:$0xf]
  %v94 = vld [vmem:[%s1 + $0xd4] sm:$0xf]
  %v95 = vld [vmem:[%s1 + $0xd8] sm:$0xf]
  %v96 = vld [vmem:[%s1 + $0xdc] sm:$0xf]
  %v97 = vld [vmem:[%s1 + $0xe0] sm:$0xf]
  %v98 = vld [vmem:[%s1 + $0xe4] sm:$0xf]
  %v99 = vld [vmem:[%s1 + $0xe8] sm:$0xf]
  %v100 = vld [vmem:[%s1 + $0xec] sm:$0xf]
  %v101 = vld [vmem:[%s1 + $0xf0] sm:$0xf]
  %v102 = vld [vmem:[%s1 + $0xf4] sm:$0xf]
  %v103 = vld [vmem:[%s1 + $0xf8] sm:$0xf]
  %v104 = vld [vmem:[%s1 + $0xfc] sm:$0xf]
  %v105 = vld [vmem:[%s1 + $0x100] sm:$0xf]
  %v106 = vld [vmem:[%s1 + $0x104] sm:$0xf]
  %v107 = vld [vmem:[%s1 + $0x108] sm:$0xf]
  %v108 = vld [vmem:[%s1 + $0x10c] sm:$0xf]
  %v109 = vld [vmem:[%s1 + $0x110] sm:$0xf]
  %v110 = vld [vmem:[%s1 + $0x114] sm:$0xf]
  %v111 = vld [vmem:[%s1 + $0x118] sm:$0xf]
  %v112 = vld [vmem:[%s1 + $0x11c] sm:$0xf]
  %v113 = vld [vmem:[%s1 + $0x120] sm:$0xf]
  %v114 = vld [vmem:[%s1 + $0x124] sm:$0xf]
  %v115 = vld [vmem:[%s1 + $0x128] sm:$0xf]
  %v116 = vld [vmem:[%s1 + $0x12c] sm:$0xf]
  %v117 = vld [vmem:[%s1 + $0x130] sm:$0xf]
  %v118 = vld [vmem:[%s1 + $0x134] sm:$0xf]
  %v119 = vld [vmem:[%s1 + $0x138] sm:$0xf]
  %v120 = vld [vmem:[%s1 + $0x13c] sm:$0xf]
  %v121 = vld [vmem:[%s1 + $0x140] sm:$0xf]
  %v122 = vld [vmem:[%s1 + $0x144] sm:$0xf]
  %v123 = vld [vmem:[%s1 + $0x148] sm:$0xf]
  %v124 = vld [vmem:[%s1 + $0x14c] sm:$0xf]
  %v125 = vld [vmem:[%s1 + $0x150] sm:$0xf]
  %v126 = vld [vmem:[%s1 + $0x154] sm:$0xf]
  %v127 = vld [vmem:[%s1 + $0x158] sm:$0xf]
  %v128 = vld [vmem:[%s1 + $0x15c] sm:$0xf]
  %v129 = vld [vmem:[%s1 + $0x160] sm:$0xf]
  %v130 = vld [vmem:[%s1 + $0x164] sm:$0xf]
  %v131 = vld [vmem:[%s1 + $0x168] sm:$0xf]
  %v132 = vld [vmem:[%s1 + $0x16c] sm:$0xf]
  %v133 = vld [vmem:[%s1 + $0x170] sm:$0xf]
  %v134 = vld [vmem:[%s1 + $0x174] sm:$0xf]
  %v135 = vld [vmem:[%s1 + $0x178] sm:$0xf]
  %v136 = vld [vmem:[%s1 + $0x17c] sm:$0xf]
  %v137 = vld [vmem:[%s1 + $0x180] sm:$0xf]
  %v138 = vld [vmem:[%s1 + $0x184] sm:$0xf]
  %v139 = vld [vmem:[%s2] sm:$0x1]
  %v141 = vlaneseq
  %v142 = vshrl.u32 %v141, 7
  %v143 = vsub.s32 0, %v142
  %v144 = vrot.slane %v139, %v143
  %v244 = vunpack.c.l.b16 %v41
  %v245 = vunpack.c.l.b16 %v42
  %v246 = vunpack.c.l.b16 %v43
  %v247 = vunpack.c.l.b16 %v44
  %v248 = vunpack.c.l.b16 %v45
  %v249 = vunpack.c.l.b16 %v46
  %v250 = vunpack.c.l.b16 %v47
  %v251 = vunpack.c.l.b16 %v48
  %v252 = vunpack.c.l.b16 %v49
  %v253 = vunpack.c.l.b16 %v50
  %v254 = vunpack.c.l.b16 %v51
  %v255 = vunpack.c.l.b16 %v52
  %v256 = vunpack.c.l.b16 %v53
  %v257 = vunpack.c.l.b16 %v54
  %v258 = vunpack.c.l.b16 %v55
  %v259 = vunpack.c.l.b16 %v56
  %v260 = vunpack.c.l.b16 %v57
  %v261 = vunpack.c.l.b16 %v58
  %v262 = vunpack.c.l.b16 %v59
  %v263 = vunpack.c.l.b16 %v60
  %v264 = vunpack.c.l.b16 %v61
  %v265 = vunpack.c.l.b16 %v62
  %v266 = vunpack.c.l.b16 %v63
  %v267 = vunpack.c.l.b16 %v64
  %v268 = vunpack.c.l.b16 %v65
  %v269 = vunpack.c.l.b16 %v66
  %v270 = vunpack.c.l.b16 %v67
  %v271 = vunpack.c.l.b16 %v68
  %v272 = vunpack.c.l.b16 %v69
  %v273 = vunpack.c.l.b16 %v70
  %v274 = vunpack.c.l.b16 %v71
  %v275 = vunpack.c.l.b16 %v72
  %v276 = vunpack.c.l.b16 %v73
  %v277 = vunpack.c.l.b16 %v74
  %v278 = vunpack.c.l.b16 %v75
  %v279 = vunpack.c.l.b16 %v76
  %v280 = vunpack.c.l.b16 %v77
  %v281 = vunpack.c.l.b16 %v78
  %v282 = vunpack.c.l.b16 %v79
  %v283 = vunpack.c.l.b16 %v80
  %v284 = vunpack.c.l.b16 %v81
  %v285 = vunpack.c.l.b16 %v82
  %v286 = vunpack.c.l.b16 %v83
  %v287 = vunpack.c.l.b16 %v84
  %v288 = vunpack.c.l.b16 %v85
  %v289 = vunpack.c.l.b16 %v86
  %v290 = vunpack.c.l.b16 %v87
  %v291 = vunpack.c.l.b16 %v88
  %v292 = vunpack.c.l.b16 %v89
  %v293 = vunpack.c.l.b16 %v90
  %v294 = vunpack.c.l.b16 %v91
  %v295 = vunpack.c.l.b16 %v92
  %v296 = vunpack.c.l.b16 %v93
  %v297 = vunpack.c.l.b16 %v94
  %v298 = vunpack.c.l.b16 %v95
  %v299 = vunpack.c.l.b16 %v96
  %v300 = vunpack.c.l.b16 %v97
  %v301 = vunpack.c.l.b16 %v98
  %v302 = vunpack.c.l.b16 %v99
  %v303 = vunpack.c.l.b16 %v100
  %v304 = vunpack.c.l.b16 %v101
  %v305 = vunpack.c.l.b16 %v102
  %v306 = vunpack.c.l.b16 %v103
  %v307 = vunpack.c.l.b16 %v104
  %v308 = vunpack.c.l.b16 %v105
  %v309 = vunpack.c.l.b16 %v106
  %v310 = vunpack.c.l.b16 %v107
  %v311 = vunpack.c.l.b16 %v108
  %v312 = vunpack.c.l.b16 %v109
  %v313 = vunpack.c.l.b16 %v110
  %v314 = vunpack.c.l.b16 %v111
  %v315 = vunpack.c.l.b16 %v112
  %v316 = vunpack.c.l.b16 %v113
  %v317 = vunpack.c.l.b16 %v114
  %v318 = vunpack.c.l.b16 %v115
  %v319 = vunpack.c.l.b16 %v116
  %v320 = vunpack.c.l.b16 %v117
  %v321 = vunpack.c.l.b16 %v118
  %v322 = vunpack.c.l.b16 %v119
  %v323 = vunpack.c.l.b16 %v120
  %v324 = vunpack.c.l.b16 %v121
  %v325 = vunpack.c.l.b16 %v122
  %v326 = vunpack.c.l.b16 %v123
  %v327 = vunpack.c.l.b16 %v124
  %v328 = vunpack.c.l.b16 %v125
  %v329 = vunpack.c.l.b16 %v126
  %v330 = vunpack.c.l.b16 %v127
  %v331 = vunpack.c.l.b16 %v128
  %v332 = vunpack.c.l.b16 %v129
  %v333 = vunpack.c.l.b16 %v130
  %v334 = vunpack.c.l.b16 %v131
  %v335 = vunpack.c.l.b16 %v132
  %v336 = vunpack.c.l.b16 %v133
  %v337 = vunpack.c.l.b16 %v134
  %v338 = vunpack.c.l.b16 %v135
  %v339 = vunpack.c.l.b16 %v136
  %v340 = vunpack.c.l.b16 %v137
  %v341 = vunpack.c.l.b16 %v138
  %v342 = vpack.c.b16 %v245, %v244
  %v343 = vpack.c.b16 %v247, %v246
  %v344 = vpack.c.b16 %v249, %v248
  %v345 = vpack.c.b16 %v251, %v250
  %v346 = vpack.c.b16 %v253, %v252
  %v347 = vpack.c.b16 %v255, %v254
  %v348 = vpack.c.b16 %v257, %v256
  %v349 = vpack.c.b16 %v259, %v258
  %v350 = vpack.c.b16 %v261, %v260
  %v351 = vpack.c.b16 %v263, %v262
  %v352 = vpack.c.b16 %v265, %v264
  %v353 = vpack.c.b16 %v267, %v266
  %v354 = vpack.c.b16 %v269, %v268
  %v355 = vpack.c.b16 %v271, %v270
  %v356 = vpack.c.b16 %v273, %v272
  %v357 = vpack.c.b16 %v275, %v274
  %v358 = vpack.c.b16 %v277, %v276
  %v359 = vpack.c.b16 %v279, %v278
  %v360 = vpack.c.b16 %v281, %v280
  %v361 = vpack.c.b16 %v283, %v282
  %v362 = vpack.c.b16 %v285, %v284
  %v363 = vpack.c.b16 %v287, %v286
  %v364 = vpack.c.b16 %v289, %v288
  %v365 = vpack.c.b16 %v291, %v290
  %v366 = vpack.c.b16 %v293, %v292
  %v367 = vpack.c.b16 %v295, %v294
  %v368 = vpack.c.b16 %v297, %v296
  %v369 = vpack.c.b16 %v299, %v298
  %v370 = vpack.c.b16 %v301, %v300
  %v371 = vpack.c.b16 %v303, %v302
  %v372 = vpack.c.b16 %v305, %v304
  %v373 = vpack.c.b16 %v307, %v306
  %v374 = vpack.c.b16 %v309, %v308
  %v375 = vpack.c.b16 %v311, %v310
  %v376 = vpack.c.b16 %v313, %v312
  %v377 = vpack.c.b16 %v315, %v314
  %v378 = vpack.c.b16 %v317, %v316
  %v379 = vpack.c.b16 %v319, %v318
  %v380 = vpack.c.b16 %v321, %v320
  %v381 = vpack.c.b16 %v323, %v322
  %v382 = vpack.c.b16 %v325, %v324
  %v383 = vpack.c.b16 %v327, %v326
  %v384 = vpack.c.b16 %v329, %v328
  %v385 = vpack.c.b16 %v331, %v330
  %v386 = vpack.c.b16 %v333, %v332
  %v387 = vpack.c.b16 %v335, %v334
  %v388 = vpack.c.b16 %v337, %v336
  %v389 = vpack.c.b16 %v339, %v338
  %v390 = vpack.c.b16 %v341, %v340
  %vm440 = vcmask 130048
  %v442 = vsel %vm440, %v40, 0
  %444 = vmatprep.subr.bf16.mxu0 0
  %445 = vmatpush1.bf16.msra.mxu0 %v349
  %446 = vmatprep.subr.bf16.mxu0 0
  %447 = vmatpush1.bf16.msra.mxu0 %v348
  %448 = vmatprep.subr.bf16.mxu0 0
  %449 = vmatpush1.bf16.msra.mxu0 %v347
  %450 = vmatprep.subr.bf16.mxu0 0
  %451 = vmatpush1.bf16.msra.mxu0 %v346
  %452 = vmatprep.subr.bf16.mxu0 0
  %453 = vmatpush1.bf16.msra.mxu0 %v345
  %454 = vmatprep.subr.bf16.mxu0 0
  %455 = vmatpush1.bf16.msra.mxu0 %v344
  %456 = vmatprep.subr.bf16.mxu0 0
  %457 = vmatpush1.bf16.msra.mxu0 %v343
  %458 = vmatprep.subr.bf16.mxu0 0
  %459 = vmatpush1.bf16.msra.mxu0 %v342
  %460 = vmatprep.subr.bf16.mxu0 0
  %461 = vmatpush2.bf16.msra.mxu0 %v357
  %462 = vmatprep.subr.bf16.mxu0 0
  %463 = vmatpush2.bf16.msra.mxu0 %v356
  %464 = vmatprep.subr.bf16.mxu0 0
  %465 = vmatpush2.bf16.msra.mxu0 %v355
  %466 = vmatprep.subr.bf16.mxu0 0
  %467 = vmatpush2.bf16.msra.mxu0 %v354
  %468 = vmatprep.subr.bf16.mxu0 0
  %469 = vmatpush2.bf16.msra.mxu0 %v353
  %470 = vmatprep.subr.bf16.mxu0 0
  %471 = vmatpush2.bf16.msra.mxu0 %v352
  %472 = vmatprep.subr.bf16.mxu0 0
  %473 = vmatpush2.bf16.msra.mxu0 %v351
  %474 = vmatprep.subr.bf16.mxu0 0
  %475 = vmatpush2.bf16.msra.mxu0 %v350
  %476 = vmatprep.mubr.bf16.mxu0 %v35
  %477 = vmatmul.mubr.bf16.gmra.mxu0 %v34
  %v478 = vpop.f32.mrf.mxu0
  %v479 = vadd.f32 %v144, %v478
  %v480 = vpop.f32.mrf.mxu0
  %v481 = vpop.f32.mrf.mxu0
  %v482 = vpop.f32.mrf.mxu0
  %483 = vdwg.mxu0
  %484 = vmatprep.subr.bf16.mxu0 0
  %485 = vmatpush1.bf16.msra.mxu0 %v365
  %486 = vmatprep.subr.bf16.mxu0 0
  %487 = vmatpush1.bf16.msra.mxu0 %v364
  %488 = vmatprep.subr.bf16.mxu0 0
  %489 = vmatpush1.bf16.msra.mxu0 %v363
  %490 = vmatprep.subr.bf16.mxu0 0
  %491 = vmatpush1.bf16.msra.mxu0 %v362
  %492 = vmatprep.subr.bf16.mxu0 0
  %493 = vmatpush1.bf16.msra.mxu0 %v361
  %494 = vmatprep.subr.bf16.mxu0 0
  %495 = vmatpush1.bf16.msra.mxu0 %v360
  %496 = vmatprep.subr.bf16.mxu0 0
  %497 = vmatpush1.bf16.msra.mxu0 %v359
  %498 = vmatprep.subr.bf16.mxu0 0
  %499 = vmatpush1.bf16.msra.mxu0 %v358
  %500 = vmatprep.subr.bf16.mxu0 0
  %501 = vmatpush2.bf16.msra.mxu0 %v373
  %502 = vmatprep.subr.bf16.mxu0 0
  %503 = vmatpush2.bf16.msra.mxu0 %v372
  %504 = vmatprep.subr.bf16.mxu0 0
  %505 = vmatpush2.bf16.msra.mxu0 %v371
  %506 = vmatprep.subr.bf16.mxu0 0
  %507 = vmatpush2.bf16.msra.mxu0 %v370
  %508 = vmatprep.subr.bf16.mxu0 0
  %509 = vmatpush2.bf16.msra.mxu0 %v369
  %510 = vmatprep.subr.bf16.mxu0 0
  %511 = vmatpush2.bf16.msra.mxu0 %v368
  %512 = vmatprep.subr.bf16.mxu0 0
  %513 = vmatpush2.bf16.msra.mxu0 %v367
  %514 = vmatprep.subr.bf16.mxu0 0
  %515 = vmatpush2.bf16.msra.mxu0 %v366
  %516 = vmatprep.mubr.bf16.mxu0 %v37
  %517 = vmatmul.mubr.bf16.gmra.mxu0 %v36
  %v518 = vpop.f32.mrf.mxu0
  %v519 = vadd.f32 %v479, %v518
  %v520 = vpop.f32.mrf.mxu0
  %v521 = vpop.f32.mrf.mxu0
  %v522 = vpop.f32.mrf.mxu0
  %523 = vdwg.mxu0
  %524 = vmatprep.subr.bf16.mxu0 0
  %525 = vmatpush1.bf16.msra.mxu0 %v381
  %526 = vmatprep.subr.bf16.mxu0 0
  %527 = vmatpush1.bf16.msra.mxu0 %v380
  %528 = vmatprep.subr.bf16.mxu0 0
  %529 = vmatpush1.bf16.msra.mxu0 %v379
  %530 = vmatprep.subr.bf16.mxu0 0
  %531 = vmatpush1.bf16.msra.mxu0 %v378
  %532 = vmatprep.subr.bf16.mxu0 0
  %533 = vmatpush1.bf16.msra.mxu0 %v377
  %534 = vmatprep.subr.bf16.mxu0 0
  %535 = vmatpush1.bf16.msra.mxu0 %v376
  %536 = vmatprep.subr.bf16.mxu0 0
  %537 = vmatpush1.bf16.msra.mxu0 %v375
  %538 = vmatprep.subr.bf16.mxu0 0
  %539 = vmatpush1.bf16.msra.mxu0 %v374
  %540 = vmatprep.subr.bf16.mxu0 0
  %541 = vmatpush2.bf16.msra.mxu0 %v389
  %542 = vmatprep.subr.bf16.mxu0 0
  %543 = vmatpush2.bf16.msra.mxu0 %v388
  %544 = vmatprep.subr.bf16.mxu0 0
  %545 = vmatpush2.bf16.msra.mxu0 %v387
  %546 = vmatprep.subr.bf16.mxu0 0
  %547 = vmatpush2.bf16.msra.mxu0 %v386
  %548 = vmatprep.subr.bf16.mxu0 0
  %549 = vmatpush2.bf16.msra.mxu0 %v385
  %550 = vmatprep.subr.bf16.mxu0 0
  %551 = vmatpush2.bf16.msra.mxu0 %v384
  %552 = vmatprep.subr.bf16.mxu0 0
  %553 = vmatpush2.bf16.msra.mxu0 %v383
  %554 = vmatprep.subr.bf16.mxu0 0
  %555 = vmatpush2.bf16.msra.mxu0 %v382
  %556 = vmatprep.mubr.bf16.mxu0 %v39
  %557 = vmatmul.mubr.bf16.gmra.mxu0 %v38
  %v558 = vpop.f32.mrf.mxu0
  %v559 = vadd.f32 %v519, %v558
  %v560 = vpop.f32.mrf.mxu0
  %v561 = vpop.f32.mrf.mxu0
  %v562 = vpop.f32.mrf.mxu0
  %563 = vdwg.mxu0
  %564 = vmatprep.subr.bf16.mxu0 0
  %565 = vmatpush1.bf16.msra.mxu0 0
  %566 = vmatprep.subr.bf16.mxu0 0
  %567 = vmatpush1.bf16.msra.mxu0 0
  %568 = vmatprep.subr.bf16.mxu0 0
  %569 = vmatpush1.bf16.msra.mxu0 0
  %570 = vmatprep.subr.bf16.mxu0 0
  %571 = vmatpush1.bf16.msra.mxu0 0
  %572 = vmatprep.subr.bf16.mxu0 0
  %573 = vmatpush1.bf16.msra.mxu0 0
  %574 = vmatprep.subr.bf16.mxu0 0
  %575 = vmatpush1.bf16.msra.mxu0 0
  %576 = vmatprep.subr.bf16.mxu0 0
  %577 = vmatpush1.bf16.msra.mxu0 0
  %578 = vmatprep.subr.bf16.mxu0 0
  %579 = vmatpush1.bf16.msra.mxu0 %v390
  %580 = vmatprep.subr.bf16.mxu0 0
  %581 = vmatpush2.bf16.msra.mxu0 0
  %582 = vmatprep.subr.bf16.mxu0 0
  %583 = vmatpush2.bf16.msra.mxu0 0
  %584 = vmatprep.subr.bf16.mxu0 0
  %585 = vmatpush2.bf16.msra.mxu0 0
  %586 = vmatprep.subr.bf16.mxu0 0
  %587 = vmatpush2.bf16.msra.mxu0 0
  %588 = vmatprep.subr.bf16.mxu0 0
  %589 = vmatpush2.bf16.msra.mxu0 0
  %590 = vmatprep.subr.bf16.mxu0 0
  %591 = vmatpush2.bf16.msra.mxu0 0
  %592 = vmatprep.subr.bf16.mxu0 0
  %593 = vmatpush2.bf16.msra.mxu0 0
  %594 = vmatprep.subr.bf16.mxu0 0
  %595 = vmatpush2.bf16.msra.mxu0 0
  %596 = vmatprep.mubr.bf16.mxu0 0
  %597 = vmatmul.mubr.bf16.gmra.mxu0 %v442
  %v598 = vpop.f32.mrf.mxu0
  %v599 = vadd.f32 %v559, %v598
  %v600 = vpop.f32.mrf.mxu0
  %v601 = vpop.f32.mrf.mxu0
  %v602 = vpop.f32.mrf.mxu0
  %603 = vdwg.mxu0
  %v604 = vpack.c.bf16 %v599, %v599
  %v605 = vld [vmem:[%s3] sm:$0xf]
  %v606 = vld [vmem:[%s3 + $0x4] sm:$0x1]
  %v607 = vld [vmem:[%s4] sm:$0x1]
  %v609 = vlaneseq
  %v610 = vshrl.u32 %v609, 7
  %v611 = vsub.s32 0, %v610
  %v612 = vrot.slane %v607, %v611
  %v616 = vunpack.c.l.b16 %v605
  %v617 = vunpack.c.l.b16 %v606
  %v618 = vpack.c.b16 %v617, %v616
  %vm619 = vcmask 80896
  %v621 = vsel %vm619, %v604, 0
  %vm623 = vcmask 1044480
  %v625 = vsel %vm623, %v618, 0
  %627 = vmatprep.subr.bf16.mxu0 0
  %628 = vmatpush1.bf16.msra.mxu0 0
  %629 = vmatprep.subr.bf16.mxu0 0
  %630 = vmatpush1.bf16.msra.mxu0 0
  %631 = vmatprep.subr.bf16.mxu0 0
  %632 = vmatpush1.bf16.msra.mxu0 0
  %633 = vmatprep.subr.bf16.mxu0 0
  %634 = vmatpush1.bf16.msra.mxu0 0
  %635 = vmatprep.subr.bf16.mxu0 0
  %636 = vmatpush1.bf16.msra.mxu0 0
  %637 = vmatprep.subr.bf16.mxu0 0
  %638 = vmatpush1.bf16.msra.mxu0 0
  %639 = vmatprep.subr.bf16.mxu0 0
  %640 = vmatpush1.bf16.msra.mxu0 0
  %641 = vmatprep.subr.bf16.mxu0 0
  %642 = vmatpush1.bf16.msra.mxu0 %v625
  %643 = vmatprep.subr.bf16.mxu0 0
  %644 = vmatpush2.bf16.msra.mxu0 0
  %645 = vmatprep.subr.bf16.mxu0 0
  %646 = vmatpush2.bf16.msra.mxu0 0
  %647 = vmatprep.subr.bf16.mxu0 0
  %648 = vmatpush2.bf16.msra.mxu0 0
  %649 = vmatprep.subr.bf16.mxu0 0
  %650 = vmatpush2.bf16.msra.mxu0 0
  %651 = vmatprep.subr.bf16.mxu0 0
  %652 = vmatpush2.bf16.msra.mxu0 0
  %653 = vmatprep.subr.bf16.mxu0 0
  %654 = vmatpush2.bf16.msra.mxu0 0
  %655 = vmatprep.subr.bf16.mxu0 0
  %656 = vmatpush2.bf16.msra.mxu0 0
  %657 = vmatprep.subr.bf16.mxu0 0
  %658 = vmatpush2.bf16.msra.mxu0 0
  %659 = vmatprep.mubr.bf16.mxu0 0
  %660 = vmatmul.mubr.bf16.gmra.mxu0 %v621
  %v661 = vpop.f32.mrf.mxu0
  %v662 = vadd.f32 %v612, %v661
  %v663 = vpop.f32.mrf.mxu0
  %v664 = vpop.f32.mrf.mxu0
  %v665 = vpop.f32.mrf.mxu0
  %666 = vdwg.mxu0
  %v667 = vmax.f32 %v662, -30.0
  %v668 = vmin.f32 %v667, 30.0
  %v669 = vsub.f32 0.0, %v668
  %v670 = vmul.f32 %v669, 1.442695
  %v671 = vpow.pop %v670
  %v672 = vadd.f32 %v671, 1.0
  %v673 = vrcp.pop %v672
  %v674 = vpack.c.bf16 %v673, %v673
  %v675 = vld [vmem:[%s5] sm:$0xf]
  %v676 = vld [vmem:[%s5 + $0x4] sm:$0x1]
  %v677 = vld [vmem:[%s6] sm:$0x1]
  %v679 = vlaneseq
  %v680 = vshrl.u32 %v679, 7
  %v681 = vsub.s32 0, %v680
  %v682 = vrot.slane %v677, %v681
  %v686 = vunpack.c.l.b16 %v675
  %v687 = vunpack.c.l.b16 %v676
  %v688 = vpack.c.b16 %v687, %v686
  %v690 = vsel %vm619, %v674, 0
  %v693 = vsel %vm623, %v688, 0
  %695 = vmatprep.subr.bf16.mxu0 0
  %696 = vmatpush1.bf16.msra.mxu0 0
  %697 = vmatprep.subr.bf16.mxu0 0
  %698 = vmatpush1.bf16.msra.mxu0 0
  %699 = vmatprep.subr.bf16.mxu0 0
  %700 = vmatpush1.bf16.msra.mxu0 0
  %701 = vmatprep.subr.bf16.mxu0 0
  %702 = vmatpush1.bf16.msra.mxu0 0
  %703 = vmatprep.subr.bf16.mxu0 0
  %704 = vmatpush1.bf16.msra.mxu0 0
  %705 = vmatprep.subr.bf16.mxu0 0
  %706 = vmatpush1.bf16.msra.mxu0 0
  %707 = vmatprep.subr.bf16.mxu0 0
  %708 = vmatpush1.bf16.msra.mxu0 0
  %709 = vmatprep.subr.bf16.mxu0 0
  %710 = vmatpush1.bf16.msra.mxu0 %v693
  %711 = vmatprep.subr.bf16.mxu0 0
  %712 = vmatpush2.bf16.msra.mxu0 0
  %713 = vmatprep.subr.bf16.mxu0 0
  %714 = vmatpush2.bf16.msra.mxu0 0
  %715 = vmatprep.subr.bf16.mxu0 0
  %716 = vmatpush2.bf16.msra.mxu0 0
  %717 = vmatprep.subr.bf16.mxu0 0
  %718 = vmatpush2.bf16.msra.mxu0 0
  %719 = vmatprep.subr.bf16.mxu0 0
  %720 = vmatpush2.bf16.msra.mxu0 0
  %721 = vmatprep.subr.bf16.mxu0 0
  %722 = vmatpush2.bf16.msra.mxu0 0
  %723 = vmatprep.subr.bf16.mxu0 0
  %724 = vmatpush2.bf16.msra.mxu0 0
  %725 = vmatprep.subr.bf16.mxu0 0
  %726 = vmatpush2.bf16.msra.mxu0 0
  %727 = vmatprep.mubr.bf16.mxu0 0
  %728 = vmatmul.mubr.bf16.gmra.mxu0 %v690
  %v729 = vpop.f32.mrf.mxu0
  %v730 = vadd.f32 %v682, %v729
  %v731 = vpop.f32.mrf.mxu0
  %v732 = vpop.f32.mrf.mxu0
  %v733 = vpop.f32.mrf.mxu0
  %734 = vdwg.mxu0
  %v735 = vmax.f32 %v730, -30.0
  %v736 = vmin.f32 %v735, 30.0
  %v737 = vsub.f32 0.0, %v736
  %v738 = vmul.f32 %v737, 1.442695
  %v739 = vpow.pop %v738
  %v740 = vadd.f32 %v739, 1.0
  %v741 = vrcp.pop %v740
  %v742 = vpack.c.bf16 %v741, %v741
  %743 = vst [vmem:[%s7] sm:$0xf] %v742
  // Predicated region
  $region30: #{mlp_net_pallas.1} parent=0 // pred_check
    _
  $region31: #{mlp_net_pallas.1} parent=0 // pred_check_branch
    %745 = sbr.rel (0) target = $region33
  $region32: #{mlp_net_pallas.1} parent=0 // pred_region
    _
  $region33: #{mlp_net_pallas.1} parent=0 // pred_fallthru
    _
  // Predicated region
  $region34: #{mlp_net_pallas.1} parent=0 // pred_check
    _
  $region35: #{mlp_net_pallas.1} parent=0 // pred_check_branch
    %747 = sbr.rel (0) target = $region37
  $region36: #{mlp_net_pallas.1} parent=0 // pred_region
    _
  $region37: #{mlp_net_pallas.1} parent=0 // pred_fallthru
    _

</llo_original>
